<compile_context>
chip_gen: v7x
topology: tpu7x:2x2x1
jax: 0.10.0
libtpu: 0.0.40
codegen_flags: <defaults>
</compile_context>

<pallas_src>
import jax
import jax.numpy as jnp
from jax import lax
from jax.experimental import pallas as pl
from jax.experimental.pallas import tpu as pltpu


def _round_up(x, m):
    return ((x + m - 1) // m) * m


# ---------------------------------------------------------------------------
# Kernel 1: node projection, tiled over N (lane dim), grid ("parallel",)
#   hT  = W_pad @ xT + b_W   -> [F_pad, tNp]  (stored bf16)
#   s1T = a1^T @ hT          -> [1, tNp]      (f32)   == (h @ a1)^T
#   s2T = a2^T @ hT          -> [1, tNp]      (f32)   == (h @ a2)^T
# ---------------------------------------------------------------------------
def gat_project_kernel(w_ref, xt_ref, bwt_ref, a1t_ref, a2t_ref,
                       ht_ref, s1t_ref, s2t_ref):
    ht = jnp.dot(w_ref[...], xt_ref[...],
                 preferred_element_type=jnp.float32) + bwt_ref[...]
    ht_ref[...] = ht.astype(jnp.bfloat16)
    s1t_ref[...] = jnp.dot(a1t_ref[...], ht, preferred_element_type=jnp.float32)
    s2t_ref[...] = jnp.dot(a2t_ref[...], ht, preferred_element_type=jnp.float32)


# ---------------------------------------------------------------------------
# Kernel 2: edge gather, tiled over E, grid ("parallel",)
#   VT[:, e-tile] = (hT @ CT_tile) * alpha_tile        [F_pad, tE] bf16
# Computed once per edge tile (independent of the destination-node tiling).
# ---------------------------------------------------------------------------
def gat_gather_kernel(ht_ref, ct_ref, alpha_ref, vt_ref):
    hcol = jnp.dot(ht_ref[...], ct_ref[...],
                   preferred_element_type=jnp.float32)          # [F_pad, tE]
    vt_ref[...] = (hcol * alpha_ref[...]).astype(jnp.bfloat16)


# ---------------------------------------------------------------------------
# Kernel 3: scatter-accumulate, grid (nN "parallel", nE "arbitrary")
#   out[n-tile] += RT[n-tile, e-tile] @ VT[:, e-tile]^T         (NT matmul)
# Output block is resident across the edge axis; init at e == 0.
# ---------------------------------------------------------------------------
def gat_scatter_kernel(rt_ref, vt_ref, out_ref):
    @pl.when(pl.program_id(1) == 0)
    def _init():
        out_ref[...] = jnp.zeros_like(out_ref)

    out_ref[...] += lax.dot_general(
        rt_ref[...], vt_ref[...],
        dimension_numbers=(((1,), (1,)), ((), ())),             # [tN, F_pad]
        preferred_element_type=jnp.float32)


def gat_layer(x, edge_index, W, b_W, A, b_a, *, edge_tile=512,
              vmem_budget=40 * 1024 * 1024):
    """x: [N, F_in] f32, edge_index: [2, E] int32,
       W: [F_out, F_in], b_W: [F_out], A: [1, 2*F_out], b_a: [1]."""
    f32 = jnp.float32
    N, F_in = x.shape
    F_out = W.shape[0]
    E = edge_index.shape[1]

    LANE = 128
    F_pad = _round_up(F_out, LANE)          # lane-dense feature dim
    N_pad = _round_up(N, LANE)

    # Destination-node tile (scatter kernel, "parallel" axis).  Keep nN >= 2 so
    # both TensorCores on v7x get work; use 256-wide tiles for larger graphs to
    # fill the v6e/v7x 256x256 MXU.
    if N_pad <= LANE:
        tN = 64
    elif N_pad % 256 == 0 and N_pad >= 512:
        tN = 256
    else:
        tN = LANE
    nN = N_pad // tN

    # Projection tile over N (lane dim of hT -> multiple of 128 dividing N_pad).
    tNp = min(512, N_pad)
    while N_pad % tNp:
        tNp -= LANE
    nNp = N_pad // tNp

    # Edge tile (multiple of 128), shrunk so the gather kernel's working set
    # (resident hT + double-buffered CT / alpha / VT tiles) stays in budget
    # (v7x has only 64 MiB physical VMEM; v5e's scoped default is 16 MiB).
    tE = min(edge_tile, _round_up(E, LANE))

    def _gather_bytes(t):
        return (F_pad * N_pad * 2           # resident hT (bf16)
                + 2 * N_pad * t * 2         # double-buffered CT tile (bf16)
                + 2 * t * 4                 # double-buffered alpha tile (f32)
                + 2 * F_pad * t * 2)        # double-buffered VT output (bf16)

    while _gather_bytes(tE) > vmem_budget and tE > LANE:
        tE = max(LANE, ((tE // 2) // LANE) * LANE)
    E_pad = _round_up(E, tE)
    nE = E_pad // tE
    vmem_limit = 48 * 1024 * 1024

    # ---- parameters, padded & transposed (host-side glue) -------------------
    W_pad = jnp.zeros((F_pad, F_in), f32).at[:F_out].set(W.astype(f32))
    bwT = jnp.zeros((F_pad, 1), f32).at[:F_out, 0].set(b_W.astype(f32))
    a1T = jnp.zeros((1, F_pad), f32).at[0, :F_out].set(A[0, :F_out].astype(f32))
    a2T = jnp.zeros((1, F_pad), f32).at[0, :F_out].set(A[0, F_out:].astype(f32))
    xT = jnp.zeros((F_in, N_pad), f32).at[:, :N].set(x.astype(f32).T)

    # ---- Kernel 1: projection ------------------------------------------------
    ht, s1t, s2t = pl.pallas_call(
        gat_project_kernel,
        out_shape=(
            jax.ShapeDtypeStruct((F_pad, N_pad), jnp.bfloat16),
            jax.ShapeDtypeStruct((1, N_pad), f32),
            jax.ShapeDtypeStruct((1, N_pad), f32),
        ),
        grid_spec=pltpu.PrefetchScalarGridSpec(
            num_scalar_prefetch=0,
            grid=(nNp,),
            in_specs=[
                pl.BlockSpec((F_pad, F_in), lambda n: (0, 0)),   # W (resident)
                pl.BlockSpec((F_in, tNp), lambda n: (0, n)),     # x^T tile
                pl.BlockSpec((F_pad, 1), lambda n: (0, 0)),      # b_W
                pl.BlockSpec((1, F_pad), lambda n: (0, 0)),      # a1
                pl.BlockSpec((1, F_pad), lambda n: (0, 0)),      # a2
            ],
            out_specs=(
                pl.BlockSpec((F_pad, tNp), lambda n: (0, n)),
                pl.BlockSpec((1, tNp), lambda n: (0, n)),
                pl.BlockSpec((1, tNp), lambda n: (0, n)),
            ),
        ),
        compiler_params=pltpu.CompilerParams(
            dimension_semantics=("parallel",)),
    )(W_pad, xT, bwT, a1T, a2T)

    # ---- per-edge logits + GLOBAL softmax (O(E) glue, hoisted out of grids) --
    row = edge_index[0].astype(jnp.int32)
    col = edge_index[1].astype(jnp.int32)
    logits = s1t[0, :N][row] + s2t[0, :N][col] + b_a.astype(f32)[0]
    logits = jnp.where(logits > 0, logits, 0.2 * logits)         # LeakyReLU(0.2)
    alpha = jax.nn.softmax(logits)                               # softmax over all E edges
    alpha_pad = jnp.zeros((1, E_pad), f32).at[0, :E].set(alpha)  # padded edges -> 0

    # ---- transposed bf16 one-hot incidence matrices (exact 0/1 in bf16) ------
    # TODO(synk): replace with scalar-prefetch indexed gather/scatter for large N.
    row_p = jnp.full((E_pad,), -1, jnp.int32).at[:E].set(row)    # -1 -> all-zero col
    col_p = jnp.full((E_pad,), -1, jnp.int32).at[:E].set(col)
    node_ids = jnp.arange(N_pad, dtype=jnp.int32)[:, None]
    RT = (node_ids == row_p[None, :]).astype(jnp.bfloat16)       # [N_pad, E_pad]
    CT = (node_ids == col_p[None, :]).astype(jnp.bfloat16)       # [N_pad, E_pad]

    # ---- Kernel 2: gather h[col] * alpha, once per edge tile -----------------
    vt = pl.pallas_call(
        gat_gather_kernel,
        out_shape=jax.ShapeDtypeStruct((F_pad, E_pad), jnp.bfloat16),
        grid_spec=pltpu.PrefetchScalarGridSpec(
            num_scalar_prefetch=0,
            grid=(nE,),
            in_specs=[
                pl.BlockSpec((F_pad, N_pad), lambda e: (0, 0)),  # h^T (resident)
                pl.BlockSpec((N_pad, tE), lambda e: (0, e)),     # C^T tile
                pl.BlockSpec((1, tE), lambda e: (0, e)),         # alpha tile
            ],
            out_specs=pl.BlockSpec((F_pad, tE), lambda e: (0, e)),
        ),
        compiler_params=pltpu.CompilerParams(
            dimension_semantics=("parallel",),
            vmem_limit_bytes=vmem_limit),
        cost_estimate=pl.CostEstimate(
            flops=int(2 * F_pad * N_pad * E_pad + F_pad * E_pad),
            transcendentals=0,
            bytes_accessed=int(F_pad * N_pad * 2 + N_pad * E_pad * 2
                               + E_pad * 4 + F_pad * E_pad * 2)),
    )(ht, CT, alpha_pad)

    # ---- Kernel 3: scatter-accumulate into destination nodes -----------------
    out_pad = pl.pallas_call(
        gat_scatter_kernel,
        out_shape=jax.ShapeDtypeStruct((N_pad, F_pad), f32),
        grid_spec=pltpu.PrefetchScalarGridSpec(
            num_scalar_prefetch=0,
            grid=(nN, nE),
            in_specs=[
                pl.BlockSpec((tN, tE), lambda n, e: (n, e)),     # R^T tile
                pl.BlockSpec((F_pad, tE), lambda n, e: (0, e)),  # V^T tile
            ],
            out_specs=pl.BlockSpec((tN, F_pad), lambda n, e: (n, 0)),
        ),
        compiler_params=pltpu.CompilerParams(
            dimension_semantics=("parallel", "arbitrary"),
            vmem_limit_bytes=vmem_limit),
        cost_estimate=pl.CostEstimate(
            flops=int(2 * N_pad * E_pad * F_pad),
            transcendentals=0,
            bytes_accessed=int(N_pad * E_pad * 2 + nN * F_pad * E_pad * 2
                               + N_pad * F_pad * 4)),
    )(RT, vt)

    return out_pad[:N, :F_out]


def gat_reference(x, edge_index, W, b_W, A, b_a):
    """Pure-JAX reference mirroring the PyTorch forward."""
    h = x @ W.T + b_W
    row, col = edge_index[0], edge_index[1]
    h_row = h[row]
    h_col = h[col]
    e = jnp.concatenate([h_row, h_col], axis=1) @ A.T + b_a
    e = jnp.where(e > 0, e, 0.2 * e)
    alpha = jax.nn.softmax(e, axis=0)
    out = jnp.zeros_like(h)
    return out.at[row].add(alpha * h_col)


def _run_case(key, N, F_in, F_out, E):
    kx, kr, kc, kw, kbw, ka, kba = jax.random.split(key, 7)
    x = jax.random.normal(kx, (N, F_in), dtype=jnp.float32)
    row = jax.random.randint(kr, (E,), 0, N, dtype=jnp.int32)
    col = jax.random.randint(kc, (E,), 0, N, dtype=jnp.int32)
    edge_index = jnp.stack([row, col], axis=0)

    W = 0.1 * jax.random.normal(kw, (F_out, F_in), dtype=jnp.float32)       # W.weight
    b_W = 0.1 * jax.random.normal(kbw, (F_out,), dtype=jnp.float32)         # W.bias
    A = 0.1 * jax.random.normal(ka, (1, 2 * F_out), dtype=jnp.float32)      # a.weight
    b_a = 0.1 * jax.random.normal(kba, (1,), dtype=jnp.float32)             # a.bias

    out = gat_layer(x, edge_index, W, b_W, A, b_a)
    out = jax.block_until_ready(out)
    ref = gat_reference(x, edge_index, W, b_W, A, b_a)
    assert out.shape == (N, F_out)
    assert jnp.allclose(out, ref, rtol=2e-3, atol=2e-3), "mismatch vs reference"


if __name__ == "__main__":
    key = jax.random.PRNGKey(0)
    k1, k2 = jax.random.split(key)

    # Small case: N=16, F_in=8, F_out=32, E=40 (single edge tile, 2 node tiles).
    _run_case(k1, N=16, F_in=8, F_out=32, E=40)

    # Multi-tile case exercising the N-parallel and E-reduction axes:
    # N=200 (2 node tiles), E=700 (2 edge tiles of 512).
    _run_case(k2, N=200, F_in=8, F_out=32, E=700)

    print("KERNEL_OK")
</pallas_src>

<mosaic_0001>
module attributes {stable_mosaic.version = 11 : i64} {
  func.func @gat_project_kernel(%arg0: i32, %arg1: memref<128x8xf32, #tpu.memory_space<vmem>>, %arg2: memref<8x128xf32, #tpu.memory_space<vmem>>, %arg3: memref<128x1xf32, #tpu.memory_space<vmem>>, %arg4: memref<1x128xf32, #tpu.memory_space<vmem>>, %arg5: memref<1x128xf32, #tpu.memory_space<vmem>>, %arg6: memref<128x128xbf16, #tpu.memory_space<vmem>>, %arg7: memref<1x128xf32, #tpu.memory_space<vmem>>, %arg8: memref<1x128xf32, #tpu.memory_space<vmem>>) attributes {dimension_semantics = [#tpu.dimension_semantics<parallel>], iteration_bounds = array<i64: 1>, scalar_prefetch = 0 : i64, scratch_operands = 0 : i64, tpu.core_type = #tpu.core_type<tc>, window_params = [{pipeline_mode = #tpu.pipeline_mode<synchronous>, transform_indices = @transform_0, window_bounds = array<i64: 128, 8>}, {transform_indices = @transform_1, window_bounds = array<i64: 8, 128>}, {pipeline_mode = #tpu.pipeline_mode<synchronous>, transform_indices = @transform_2, window_bounds = array<i64: 128, 1>}, {pipeline_mode = #tpu.pipeline_mode<synchronous>, transform_indices = @transform_3, window_bounds = array<i64: 1, 128>}, {pipeline_mode = #tpu.pipeline_mode<synchronous>, transform_indices = @transform_4, window_bounds = array<i64: 1, 128>}, {transform_indices = @transform_5, window_bounds = array<i64: 128, 128>}, {transform_indices = @transform_6, window_bounds = array<i64: 1, 128>}, {transform_indices = @transform_7, window_bounds = array<i64: 1, 128>}]} {
    %c0 = arith.constant 0 : index
    %c0_0 = arith.constant 0 : index
    %0 = vector.load %arg1[%c0, %c0_0] : memref<128x8xf32, #tpu.memory_space<vmem>>, vector<128x8xf32>
    %c0_1 = arith.constant 0 : index
    %c0_2 = arith.constant 0 : index
    %1 = vector.load %arg2[%c0_1, %c0_2] : memref<8x128xf32, #tpu.memory_space<vmem>>, vector<8x128xf32>
    %cst = arith.constant dense<0.000000e+00> : vector<128x128xf32>
    %2 = tpu.matmul %0, %1, %cst {dimension_numbers = #tpu.dot_dimension_numbers<[1], [0], [0], [1], [0, 0, 1, 1], [], []>} : vector<128x8xf32>, vector<8x128xf32>, vector<128x128xf32> -> vector<128x128xf32>
    %c0_3 = arith.constant 0 : index
    %c0_4 = arith.constant 0 : index
    %3 = vector.load %arg3[%c0_3, %c0_4] : memref<128x1xf32, #tpu.memory_space<vmem>>, vector<128x1xf32>
    %4 = vector.broadcast %3 : vector<128x1xf32> to vector<128x128xf32>
    %5 = arith.addf %2, %4 : vector<128x128xf32>
    %6 = arith.truncf %5 : vector<128x128xf32> to vector<128x128xbf16>
    %c0_5 = arith.constant 0 : index
    %c0_6 = arith.constant 0 : index
    %7 = vector.load %arg6[%c0_5, %c0_6] : memref<128x128xbf16, #tpu.memory_space<vmem>>, vector<128x128xbf16>
    tpu.vector_store %arg6[%c0_5, %c0_6], %6 {strides = array<i32>} : memref<128x128xbf16, #tpu.memory_space<vmem>>, vector<128x128xbf16>,
    %c0_7 = arith.constant 0 : index
    %c0_8 = arith.constant 0 : index
    %8 = vector.load %arg4[%c0_7, %c0_8] : memref<1x128xf32, #tpu.memory_space<vmem>>, vector<1x128xf32>
    %cst_9 = arith.constant dense<0.000000e+00> : vector<1x128xf32>
    %9 = tpu.matmul %8, %5, %cst_9 {dimension_numbers = #tpu.dot_dimension_numbers<[1], [0], [0], [1], [0, 0, 1, 1], [], []>} : vector<1x128xf32>, vector<128x128xf32>, vector<1x128xf32> -> vector<1x128xf32>
    %c0_10 = arith.constant 0 : index
    %c0_11 = arith.constant 0 : index
    %10 = vector.load %arg7[%c0_10, %c0_11] : memref<1x128xf32, #tpu.memory_space<vmem>>, vector<1x128xf32>
    tpu.vector_store %arg7[%c0_10, %c0_11], %9 {strides = array<i32>} : memref<1x128xf32, #tpu.memory_space<vmem>>, vector<1x128xf32>,
    %c0_12 = arith.constant 0 : index
    %c0_13 = arith.constant 0 : index
    %11 = vector.load %arg5[%c0_12, %c0_13] : memref<1x128xf32, #tpu.memory_space<vmem>>, vector<1x128xf32>
    %cst_14 = arith.constant dense<0.000000e+00> : vector<1x128xf32>
    %12 = tpu.matmul %11, %5, %cst_14 {dimension_numbers = #tpu.dot_dimension_numbers<[1], [0], [0], [1], [0, 0, 1, 1], [], []>} : vector<1x128xf32>, vector<128x128xf32>, vector<1x128xf32> -> vector<1x128xf32>
    %c0_15 = arith.constant 0 : index
    %c0_16 = arith.constant 0 : index
    %13 = vector.load %arg8[%c0_15, %c0_16] : memref<1x128xf32, #tpu.memory_space<vmem>>, vector<1x128xf32>
    tpu.vector_store %arg8[%c0_15, %c0_16], %12 {strides = array<i32>} : memref<1x128xf32, #tpu.memory_space<vmem>>, vector<1x128xf32>,
    return
  }
  func.func @transform_0(%arg0: i32) -> (i32, i32) {
    %c0_i32 = arith.constant 0 : i32
    %c0_i32_0 = arith.constant 0 : i32
    %c0_i32_1 = arith.constant 0 : i32
    return %c0_i32, %c0_i32_0 : i32, i32
  }
  func.func @transform_1(%arg0: i32) -> (i32, i32) {
    %c0_i32 = arith.constant 0 : i32
    %c0_i32_0 = arith.constant 0 : i32
    return %c0_i32, %arg0 : i32, i32
  }
  func.func @transform_2(%arg0: i32) -> (i32, i32) {
    %c0_i32 = arith.constant 0 : i32
    %c0_i32_0 = arith.constant 0 : i32
    %c0_i32_1 = arith.constant 0 : i32
    return %c0_i32, %c0_i32_0 : i32, i32
  }
  func.func @transform_3(%arg0: i32) -> (i32, i32) {
    %c0_i32 = arith.constant 0 : i32
    %c0_i32_0 = arith.constant 0 : i32
    %c0_i32_1 = arith.constant 0 : i32
    return %c0_i32, %c0_i32_0 : i32, i32
  }
  func.func @transform_4(%arg0: i32) -> (i32, i32) {
    %c0_i32 = arith.constant 0 : i32
    %c0_i32_0 = arith.constant 0 : i32
    %c0_i32_1 = arith.constant 0 : i32
    return %c0_i32, %c0_i32_0 : i32, i32
  }
  func.func @transform_5(%arg0: i32) -> (i32, i32) {
    %c0_i32 = arith.constant 0 : i32
    %c0_i32_0 = arith.constant 0 : i32
    return %c0_i32, %arg0 : i32, i32
  }
  func.func @transform_6(%arg0: i32) -> (i32, i32) {
    %c0_i32 = arith.constant 0 : i32
    %c0_i32_0 = arith.constant 0 : i32
    return %c0_i32, %arg0 : i32, i32
  }
  func.func @transform_7(%arg0: i32) -> (i32, i32) {
    %c0_i32 = arith.constant 0 : i32
    %c0_i32_0 = arith.constant 0 : i32
    return %c0_i32, %arg0 : i32, i32
  }
}

</mosaic_0001>

<llo_original>
// kernel: tpu_custom_call.1
$region0: #{tpu_custom_call.1}
  #allocation0 [shape = 'u32[]', space=smem, size = 0x4, offset = 0x4, fixed_abs, tag = 'smem constant byte address 0x4 - core index']
  #allocation1 [shape = 'u32[144,128]{1,0:T(1,128)}', space=vmem, size = 0x12000, scoped, tag = 'internal scratch']
  %s0 = inlined_call_operand.vmem [shape: f32[128,8], index: 0, kind: input, shape index: {}]
  %s1 = inlined_call_operand.vmem [shape: f32[8,128], index: 1, kind: input, shape index: {}]
  %s2 = inlined_call_operand.vmem [shape: f32[128,1], index: 2, kind: input, shape index: {}]
  %s3 = inlined_call_operand.vmem [shape: f32[1,128], index: 3, kind: input, shape index: {}]
  %s4 = inlined_call_operand.vmem [shape: f32[1,128], index: 4, kind: input, shape index: {}]
  %s5 = inlined_call_operand.hbm [shape: bf16[128,128], index: 5, kind: output, shape index: {0}]
  %s6 = inlined_call_operand.hbm [shape: f32[1,128], index: 6, kind: output, shape index: {1}]
  %s7 = inlined_call_operand.hbm [shape: f32[1,128], index: 7, kind: output, shape index: {2}]
  %8 = xla_tuple %s5, %s6, %s7
  %s9 = sld [smem:[#allocation0]]
  $region46: #{tpu_custom_call.1} parent=0
    _
  %s11 = ssub.s32 1, %s9
  %s12 = scalar_select 0, %s11, %s9
  $region1: #{tpu_custom_call.1} parent=0
    #allocation2 [shape = 'u8[32768]{0}', space=vmem, size = 0x8000, scoped, tag = 'output window, operand 0, single buffered']
    #allocation3 [shape = 's32[1]{0}', space=sflag, size = 0x4, scoped, tag = 'scoped memory for tpu_custom_call.1']
    #allocation4 [shape = 'u8[512]{0}', space=vmem, size = 0x400, scoped, tag = 'output window, operand 1, single buffered']
    #allocation5 [shape = 's32[1]{0}', space=sflag, size = 0x4, scoped, tag = 'scoped memory for tpu_custom_call.1']
    #allocation6 [shape = 'u8[512]{0}', space=vmem, size = 0x400, scoped, tag = 'output window, operand 2, single buffered']
    %13 = vsyncpa [#allocation3], 0
    %14 = vsyncpa [#allocation5], 0
    // Predicated region
    $region2: #{tpu_custom_call.1} parent=1 // pred_check
      _
    $region3: #{tpu_custom_call.1} parent=1 // pred_check_branch
      %16 = sbr.rel (0) target = $region5
    $region4: #{tpu_custom_call.1} parent=1 // pred_region
      _
    $region5: #{tpu_custom_call.1} parent=1 // pred_fallthru
      _
    // Predicated region
    $region6: #{tpu_custom_call.1} parent=1 // pred_check
      _
    $region7: #{tpu_custom_call.1} parent=1 // pred_check_branch
      %18 = sbr.rel (0) target = $region9
    $region8: #{tpu_custom_call.1} parent=1 // pred_region
      _
    $region9: #{tpu_custom_call.1} parent=1 // pred_fallthru
      _
    // Predicated region
    $region10: #{tpu_custom_call.1} parent=1 // pred_check
      _
    $region11: #{tpu_custom_call.1} parent=1 // pred_check_branch
      %20 = sbr.rel (0) target = $region13
    $region12: #{tpu_custom_call.1} parent=1 // pred_region
      _
    $region13: #{tpu_custom_call.1} parent=1 // pred_fallthru
      _
    // Predicated region
    $region14: #{tpu_custom_call.1} parent=1 // pred_check
      _
    $region15: #{tpu_custom_call.1} parent=1 // pred_check_branch
      %22 = sbr.rel (0) target = $region17
    $region16: #{tpu_custom_call.1} parent=1 // pred_region
      _
    $region17: #{tpu_custom_call.1} parent=1 // pred_fallthru
      _
    // Predicated region
    $region18: #{tpu_custom_call.1} parent=1 // pred_check
      _
    $region19: #{tpu_custom_call.1} parent=1 // pred_check_branch
      %24 = sbr.rel (0) target = $region21
    $region20: #{tpu_custom_call.1} parent=1 // pred_region
      _
    $region21: #{tpu_custom_call.1} parent=1 // pred_fallthru
      _
    %v25 = vld [vmem:[%s0] sm:$0xff]
    %v26 = vld [vmem:[%s0 + $0x8] sm:$0xff]
    %v27 = vld [vmem:[%s0 + $0x10] sm:$0xff]
    %v28 = vld [vmem:[%s0 + $0x18] sm:$0xff]
    %v29 = vld [vmem:[%s0 + $0x20] sm:$0xff]
    %v30 = vld [vmem:[%s0 + $0x28] sm:$0xff]
    %v31 = vld [vmem:[%s0 + $0x30] sm:$0xff]
    %v32 = vld [vmem:[%s0 + $0x38] sm:$0xff]
    %v33 = vld [vmem:[%s0 + $0x40] sm:$0xff]
    %v34 = vld [vmem:[%s0 + $0x48] sm:$0xff]
    %v35 = vld [vmem:[%s0 + $0x50] sm:$0xff]
    %v36 = vld [vmem:[%s0 + $0x58] sm:$0xff]
    %v37 = vld [vmem:[%s0 + $0x60] sm:$0xff]
    %v38 = vld [vmem:[%s0 + $0x68] sm:$0xff]
    %v39 = vld [vmem:[%s0 + $0x70] sm:$0xff]
    %v40 = vld [vmem:[%s0 + $0x78] sm:$0xff]
    %v41 = vld [vmem:[%s1] sm:$0xff]
    %v42 = vld [vmem:[%s2] sm:$0xff]
    %v43 = vld [vmem:[%s2 + $0x8] sm:$0xff]
    %v44 = vld [vmem:[%s2 + $0x10] sm:$0xff]
    %v45 = vld [vmem:[%s2 + $0x18] sm:$0xff]
    %v46 = vld [vmem:[%s2 + $0x20] sm:$0xff]
    %v47 = vld [vmem:[%s2 + $0x28] sm:$0xff]
    %v48 = vld [vmem:[%s2 + $0x30] sm:$0xff]
    %v49 = vld [vmem:[%s2 + $0x38] sm:$0xff]
    %v50 = vld [vmem:[%s2 + $0x40] sm:$0xff]
    %v51 = vld [vmem:[%s2 + $0x48] sm:$0xff]
    %v52 = vld [vmem:[%s2 + $0x50] sm:$0xff]
    %v53 = vld [vmem:[%s2 + $0x58] sm:$0xff]
    %v54 = vld [vmem:[%s2 + $0x60] sm:$0xff]
    %v55 = vld [vmem:[%s2 + $0x68] sm:$0xff]
    %v56 = vld [vmem:[%s2 + $0x70] sm:$0xff]
    %v57 = vld [vmem:[%s2 + $0x78] sm:$0xff]
    %59 = vset.pattern.permute.xlu0 0
    %60 = vperm.xlu0 %59, %v42
    %v61 = vpop.permute.xlu0 %60
    %64 = vset.pattern.permute.xlu0 0
    %65 = vperm.xlu0 %64, %v43
    %v66 = vpop.permute.xlu0 %65
    %69 = vset.pattern.permute.xlu0 0
    %70 = vperm.xlu0 %69, %v44
    %v71 = vpop.permute.xlu0 %70
    %74 = vset.pattern.permute.xlu0 0
    %75 = vperm.xlu0 %74, %v45
    %v76 = vpop.permute.xlu0 %75
    %79 = vset.pattern.permute.xlu0 0
    %80 = vperm.xlu0 %79, %v46
    %v81 = vpop.permute.xlu0 %80
    %84 = vset.pattern.permute.xlu0 0
    %85 = vperm.xlu0 %84, %v47
    %v86 = vpop.permute.xlu0 %85
    %89 = vset.pattern.permute.xlu0 0
    %90 = vperm.xlu0 %89, %v48
    %v91 = vpop.permute.xlu0 %90
    %94 = vset.pattern.permute.xlu0 0
    %95 = vperm.xlu0 %94, %v49
    %v96 = vpop.permute.xlu0 %95
    %99 = vset.pattern.permute.xlu0 0
    %100 = vperm.xlu0 %99, %v50
    %v101 = vpop.permute.xlu0 %100
    %104 = vset.pattern.permute.xlu0 0
    %105 = vperm.xlu0 %104, %v51
    %v106 = vpop.permute.xlu0 %105
    %109 = vset.pattern.permute.xlu0 0
    %110 = vperm.xlu0 %109, %v52
    %v111 = vpop.permute.xlu0 %110
    %114 = vset.pattern.permute.xlu0 0
    %115 = vperm.xlu0 %114, %v53
    %v116 = vpop.permute.xlu0 %115
    %119 = vset.pattern.permute.xlu0 0
    %120 = vperm.xlu0 %119, %v54
    %v121 = vpop.permute.xlu0 %120
    %124 = vset.pattern.permute.xlu0 0
    %125 = vperm.xlu0 %124, %v55
    %v126 = vpop.permute.xlu0 %125
    %129 = vset.pattern.permute.xlu0 0
    %130 = vperm.xlu0 %129, %v56
    %v131 = vpop.permute.xlu0 %130
    %134 = vset.pattern.permute.xlu0 0
    %135 = vperm.xlu0 %134, %v57
    %v136 = vpop.permute.xlu0 %135
    %vm138 = vcmask 64512
    %v140 = vsel %vm138, %v25, 0
    %v143 = vsel %vm138, %v26, 0
    %v146 = vsel %vm138, %v27, 0
    %v149 = vsel %vm138, %v28, 0
    %v152 = vsel %vm138, %v29, 0
    %v155 = vsel %vm138, %v30, 0
    %v158 = vsel %vm138, %v31, 0
    %v161 = vsel %vm138, %v32, 0
    %v164 = vsel %vm138, %v33, 0
    %v167 = vsel %vm138, %v34, 0
    %v170 = vsel %vm138, %v35, 0
    %v173 = vsel %vm138, %v36, 0
    %v176 = vsel %vm138, %v37, 0
    %v179 = vsel %vm138, %v38, 0
    %v182 = vsel %vm138, %v39, 0
    %v185 = vsel %vm138, %v40, 0
    %187 = vmatprep.subr.mxu0 0.0
    %188 = vmatpush1.msra.mxu0 %v41
    %189 = vmatprep.subr.mxu0 0.0
    %190 = vmatpush1.msra.mxu0 0.0
    %191 = vmatprep.subr.mxu0 0.0
    %192 = vmatpush1.msra.mxu0 0.0
    %193 = vmatprep.subr.mxu0 0.0
    %194 = vmatpush1.msra.mxu0 0.0
    %195 = vmatprep.subr.mxu0 0.0
    %196 = vmatpush1.msra.mxu0 0.0
    %197 = vmatprep.subr.mxu0 0.0
    %198 = vmatpush1.msra.mxu0 0.0
    %199 = vmatprep.subr.mxu0 0.0
    %200 = vmatpush1.msra.mxu0 0.0
    %201 = vmatprep.subr.mxu0 0.0
    %202 = vmatpush1.msra.mxu0 0.0
    %203 = vmatprep.subr.mxu0 0.0
    %204 = vmatpush1.msra.mxu0 0.0
    %205 = vmatprep.subr.mxu0 0.0
    %206 = vmatpush1.msra.mxu0 0.0
    %207 = vmatprep.subr.mxu0 0.0
    %208 = vmatpush1.msra.mxu0 0.0
    %209 = vmatprep.subr.mxu0 0.0
    %210 = vmatpush1.msra.mxu0 0.0
    %211 = vmatprep.subr.mxu0 0.0
    %212 = vmatpush1.msra.mxu0 0.0
    %213 = vmatprep.subr.mxu0 0.0
    %214 = vmatpush1.msra.mxu0 0.0
    %215 = vmatprep.subr.mxu0 0.0
    %216 = vmatpush1.msra.mxu0 0.0
    %217 = vmatprep.subr.mxu0 0.0
    %218 = vmatpush1.msra.mxu0 0.0
    %219 = vmatprep.subr.mxu0 0.0
    %220 = vmatpush1.msra.mxu0 0.0
    %221 = vmatprep.subr.mxu0 0.0
    %222 = vmatpush1.msra.mxu0 0.0
    %223 = vmatprep.subr.mxu0 0.0
    %224 = vmatpush1.msra.mxu0 0.0
    %225 = vmatprep.subr.mxu0 0.0
    %226 = vmatpush1.msra.mxu0 0.0
    %227 = vmatprep.subr.mxu0 0.0
    %228 = vmatpush1.msra.mxu0 0.0
    %229 = vmatprep.subr.mxu0 0.0
    %230 = vmatpush1.msra.mxu0 0.0
    %231 = vmatprep.subr.mxu0 0.0
    %232 = vmatpush1.msra.mxu0 0.0
    %233 = vmatprep.subr.mxu0 0.0
    %234 = vmatpush1.msra.mxu0 0.0
    %235 = vmatprep.subr.mxu0 0.0
    %236 = vmatpush1.msra.mxu0 0.0
    %237 = vmatprep.subr.mxu0 0.0
    %238 = vmatpush1.msra.mxu0 0.0
    %239 = vmatprep.subr.mxu0 0.0
    %240 = vmatpush1.msra.mxu0 0.0
    %241 = vmatprep.subr.mxu0 0.0
    %242 = vmatpush1.msra.mxu0 0.0
    %243 = vmatprep.subr.mxu0 0.0
    %244 = vmatpush1.msra.mxu0 0.0
    %245 = vmatprep.subr.mxu0 0.0
    %246 = vmatpush1.msra.mxu0 0.0
    %247 = vmatprep.subr.mxu0 0.0
    %248 = vmatpush1.msra.mxu0 0.0
    %249 = vmatprep.subr.mxu0 0.0
    %250 = vmatpush1.msra.mxu0 0.0
    %251 = vmatprep.mubr.f32.mxu0 0.0
    %252 = vmatmul.mubr.f32.gmra.mrb[0].mxu0 %v140
    %v253 = vpop.f32.mrb[0].mxu0
    %v254 = vadd.f32 %v61, %v253
    %v255 = vpop.f32.mrb[0].mxu0
    %256 = vmatprep.mubr.f32.mxu0 0.0
    %257 = vmatmul.mubr.f32.gmra.mrb[0].mxu0 %v143
    %v258 = vpop.f32.mrb[0].mxu0
    %v259 = vadd.f32 %v66, %v258
    %v260 = vpop.f32.mrb[0].mxu0
    %261 = vmatprep.mubr.f32.mxu0 0.0
    %262 = vmatmul.mubr.f32.gmra.mrb[0].mxu0 %v146
    %v263 = vpop.f32.mrb[0].mxu0
    %v264 = vadd.f32 %v71, %v263
    %v265 = vpop.f32.mrb[0].mxu0
    %266 = vmatprep.mubr.f32.mxu0 0.0
    %267 = vmatmul.mubr.f32.gmra.mrb[0].mxu0 %v149
    %v268 = vpop.f32.mrb[0].mxu0
    %v269 = vadd.f32 %v76, %v268
    %v270 = vpop.f32.mrb[0].mxu0
    %271 = vmatprep.mubr.f32.mxu0 0.0
    %272 = vmatmul.mubr.f32.gmra.mrb[0].mxu0 %v152
    %v273 = vpop.f32.mrb[0].mxu0
    %v274 = vadd.f32 %v81, %v273
    %v275 = vpop.f32.mrb[0].mxu0
    %276 = vmatprep.mubr.f32.mxu0 0.0
    %277 = vmatmul.mubr.f32.gmra.mrb[0].mxu0 %v155
    %v278 = vpop.f32.mrb[0].mxu0
    %v279 = vadd.f32 %v86, %v278
    %v280 = vpop.f32.mrb[0].mxu0
    %281 = vmatprep.mubr.f32.mxu0 0.0
    %282 = vmatmul.mubr.f32.gmra.mrb[0].mxu0 %v158
    %v283 = vpop.f32.mrb[0].mxu0
    %v284 = vadd.f32 %v91, %v283
    %v285 = vpop.f32.mrb[0].mxu0
    %286 = vmatprep.mubr.f32.mxu0 0.0
    %287 = vmatmul.mubr.f32.gmra.mrb[0].mxu0 %v161
    %v288 = vpop.f32.mrb[0].mxu0
    %v289 = vadd.f32 %v96, %v288
    %v290 = vpop.f32.mrb[0].mxu0
    %291 = vmatprep.mubr.f32.mxu0 0.0
    %292 = vmatmul.mubr.f32.gmra.mrb[0].mxu0 %v164
    %v293 = vpop.f32.mrb[0].mxu0
    %v294 = vadd.f32 %v101, %v293
    %v295 = vpop.f32.mrb[0].mxu0
    %296 = vmatprep.mubr.f32.mxu0 0.0
    %297 = vmatmul.mubr.f32.gmra.mrb[0].mxu0 %v167
    %v298 = vpop.f32.mrb[0].mxu0
    %v299 = vadd.f32 %v106, %v298
    %v300 = vpop.f32.mrb[0].mxu0
    %301 = vmatprep.mubr.f32.mxu0 0.0
    %302 = vmatmul.mubr.f32.gmra.mrb[0].mxu0 %v170
    %v303 = vpop.f32.mrb[0].mxu0
    %v304 = vadd.f32 %v111, %v303
    %v305 = vpop.f32.mrb[0].mxu0
    %306 = vmatprep.mubr.f32.mxu0 0.0
    %307 = vmatmul.mubr.f32.gmra.mrb[0].mxu0 %v173
    %v308 = vpop.f32.mrb[0].mxu0
    %v309 = vadd.f32 %v116, %v308
    %v310 = vpop.f32.mrb[0].mxu0
    %311 = vmatprep.mubr.f32.mxu0 0.0
    %312 = vmatmul.mubr.f32.gmra.mrb[0].mxu0 %v176
    %v313 = vpop.f32.mrb[0].mxu0
    %v314 = vadd.f32 %v121, %v313
    %v315 = vpop.f32.mrb[0].mxu0
    %316 = vmatprep.mubr.f32.mxu0 0.0
    %317 = vmatmul.mubr.f32.gmra.mrb[0].mxu0 %v179
    %v318 = vpop.f32.mrb[0].mxu0
    %v319 = vadd.f32 %v126, %v318
    %v320 = vpop.f32.mrb[0].mxu0
    %321 = vmatprep.mubr.f32.mxu0 0.0
    %322 = vmatmul.mubr.f32.gmra.mrb[0].mxu0 %v182
    %v323 = vpop.f32.mrb[0].mxu0
    %v324 = vadd.f32 %v131, %v323
    %v325 = vpop.f32.mrb[0].mxu0
    %326 = vmatprep.mubr.f32.mxu0 0.0
    %327 = vmatmul.mubr.f32.gmra.mrb[0].mxu0 %v185
    %v328 = vpop.f32.mrb[0].mxu0
    %v329 = vadd.f32 %v136, %v328
    %v330 = vpop.f32.mrb[0].mxu0
    %331 = vdwg.mxu0
    %v332 = vpack.c.bf16 %v259, %v254
    %v333 = vpack.c.bf16 %v269, %v264
    %v334 = vpack.c.bf16 %v279, %v274
    %v335 = vpack.c.bf16 %v289, %v284
    %v336 = vpack.c.bf16 %v299, %v294
    %v337 = vpack.c.bf16 %v309, %v304
    %v338 = vpack.c.bf16 %v319, %v314
    %v339 = vpack.c.bf16 %v329, %v324
    %v348 = vunpack.c.l.b16 %v332
    %v349 = vunpack.c.h.b16 %v332
    %v350 = vunpack.c.l.b16 %v333
    %v351 = vunpack.c.h.b16 %v333
    %v352 = vunpack.c.l.b16 %v334
    %v353 = vunpack.c.h.b16 %v334
    %v354 = vunpack.c.l.b16 %v335
    %v355 = vunpack.c.h.b16 %v335
    %v356 = vunpack.c.l.b16 %v336
    %v357 = vunpack.c.h.b16 %v336
    %v358 = vunpack.c.l.b16 %v337
    %v359 = vunpack.c.h.b16 %v337
    %v360 = vunpack.c.l.b16 %v338
    %v361 = vunpack.c.h.b16 %v338
    %v362 = vunpack.c.l.b16 %v339
    %v363 = vunpack.c.h.b16 %v339
    %v364 = vpack.c.b16 %v348, %v348
    %v365 = vpack.c.b16 %v349, %v349
    %v366 = vpack.c.b16 %v350, %v350
    %v367 = vpack.c.b16 %v351, %v351
    %v368 = vpack.c.b16 %v352, %v352
    %v369 = vpack.c.b16 %v353, %v353
    %v370 = vpack.c.b16 %v354, %v354
    %v371 = vpack.c.b16 %v355, %v355
    %v372 = vpack.c.b16 %v356, %v356
    %v373 = vpack.c.b16 %v357, %v357
    %v374 = vpack.c.b16 %v358, %v358
    %v375 = vpack.c.b16 %v359, %v359
    %v376 = vpack.c.b16 %v360, %v360
    %v377 = vpack.c.b16 %v361, %v361
    %v378 = vpack.c.b16 %v362, %v362
    %v379 = vpack.c.b16 %v363, %v363
    %396 = vst [vmem:[#allocation2] sm:$0xf] %v364
    %397 = vst [vmem:[#allocation2 + $0x4] sm:$0xf] %v365
    %398 = vst [vmem:[#allocation2 + $0x8] sm:$0xf] %v366
    %399 = vst [vmem:[#allocation2 + $0xc] sm:$0xf] %v367
    %400 = vst [vmem:[#allocation2 + $0x10] sm:$0xf] %v368
    %401 = vst [vmem:[#allocation2 + $0x14] sm:$0xf] %v369
    %402 = vst [vmem:[#allocation2 + $0x18] sm:$0xf] %v370
    %403 = vst [vmem:[#allocation2 + $0x1c] sm:$0xf] %v371
    %404 = vst [vmem:[#allocation2 + $0x20] sm:$0xf] %v372
    %405 = vst [vmem:[#allocation2 + $0x24] sm:$0xf] %v373
    %406 = vst [vmem:[#allocation2 + $0x28] sm:$0xf] %v374
    %407 = vst [vmem:[#allocation2 + $0x2c] sm:$0xf] %v375
    %408 = vst [vmem:[#allocation2 + $0x30] sm:$0xf] %v376
    %409 = vst [vmem:[#allocation2 + $0x34] sm:$0xf] %v377
    %410 = vst [vmem:[#allocation2 + $0x38] sm:$0xf] %v378
    %411 = vst [vmem:[#allocation2 + $0x3c] sm:$0xf] %v379
    %v412 = vld [vmem:[%s3] sm:$0x1]
    %413 = vmatprep.subr.mxu0 0.0
    %414 = vmatpush1.msra.mxu0 %v254
    %415 = vmatprep.subr.mxu0 0.0
    %416 = vmatpush1.msra.mxu0 %v259
    %417 = vmatprep.subr.mxu0 0.0
    %418 = vmatpush1.msra.mxu0 %v264
    %419 = vmatprep.subr.mxu0 0.0
    %420 = vmatpush1.msra.mxu0 %v269
    %421 = vmatprep.subr.mxu0 0.0
    %422 = vmatpush1.msra.mxu0 %v274
    %423 = vmatprep.subr.mxu0 0.0
    %424 = vmatpush1.msra.mxu0 %v279
    %425 = vmatprep.subr.mxu0 0.0
    %426 = vmatpush1.msra.mxu0 %v284
    %427 = vmatprep.subr.mxu0 0.0
    %428 = vmatpush1.msra.mxu0 %v289
    %429 = vmatprep.subr.mxu0 0.0
    %430 = vmatpush1.msra.mxu0 %v294
    %431 = vmatprep.subr.mxu0 0.0
    %432 = vmatpush1.msra.mxu0 %v299
    %433 = vmatprep.subr.mxu0 0.0
    %434 = vmatpush1.msra.mxu0 %v304
    %435 = vmatprep.subr.mxu0 0.0
    %436 = vmatpush1.msra.mxu0 %v309
    %437 = vmatprep.subr.mxu0 0.0
    %438 = vmatpush1.msra.mxu0 %v314
    %439 = vmatprep.subr.mxu0 0.0
    %440 = vmatpush1.msra.mxu0 %v319
    %441 = vmatprep.subr.mxu0 0.0
    %442 = vmatpush1.msra.mxu0 %v324
    %443 = vmatprep.subr.mxu0 0.0
    %444 = vmatpush1.msra.mxu0 %v329
    %445 = vmatprep.subr.mxu0 0.0
    %446 = vmatpush1.msra.mxu0 0.0
    %447 = vmatprep.subr.mxu0 0.0
    %448 = vmatpush1.msra.mxu0 0.0
    %449 = vmatprep.subr.mxu0 0.0
    %450 = vmatpush1.msra.mxu0 0.0
    %451 = vmatprep.subr.mxu0 0.0
    %452 = vmatpush1.msra.mxu0 0.0
    %453 = vmatprep.subr.mxu0 0.0
    %454 = vmatpush1.msra.mxu0 0.0
    %455 = vmatprep.subr.mxu0 0.0
    %456 = vmatpush1.msra.mxu0 0.0
    %457 = vmatprep.subr.mxu0 0.0
    %458 = vmatpush1.msra.mxu0 0.0
    %459 = vmatprep.subr.mxu0 0.0
    %460 = vmatpush1.msra.mxu0 0.0
    %461 = vmatprep.subr.mxu0 0.0
    %462 = vmatpush1.msra.mxu0 0.0
    %463 = vmatprep.subr.mxu0 0.0
    %464 = vmatpush1.msra.mxu0 0.0
    %465 = vmatprep.subr.mxu0 0.0
    %466 = vmatpush1.msra.mxu0 0.0
    %467 = vmatprep.subr.mxu0 0.0
    %468 = vmatpush1.msra.mxu0 0.0
    %469 = vmatprep.subr.mxu0 0.0
    %470 = vmatpush1.msra.mxu0 0.0
    %471 = vmatprep.subr.mxu0 0.0
    %472 = vmatpush1.msra.mxu0 0.0
    %473 = vmatprep.subr.mxu0 0.0
    %474 = vmatpush1.msra.mxu0 0.0
    %475 = vmatprep.subr.mxu0 0.0
    %476 = vmatpush1.msra.mxu0 0.0
    %477 = vmatprep.mubr.f32.mxu0 0.0
    %478 = vmatmul.mubr.f32.gmra.mrb[0].mxu0 %v412
    %v479 = vpop.f32.mrb[0].mxu0
    %v480 = vadd.f32 0.0, %v479
    %v481 = vpop.f32.mrb[0].mxu0
    %482 = vdwg.mxu0
    %483 = vst [vmem:[#allocation4] sm:$0x1] %v480
    %v484 = vld [vmem:[%s4] sm:$0x1]
    %485 = vmatprep.subr.mxu0 0.0
    %486 = vmatpush1.msra.mxu0 %v254
    %487 = vmatprep.subr.mxu0 0.0
    %488 = vmatpush1.msra.mxu0 %v259
    %489 = vmatprep.subr.mxu0 0.0
    %490 = vmatpush1.msra.mxu0 %v264
    %491 = vmatprep.subr.mxu0 0.0
    %492 = vmatpush1.msra.mxu0 %v269
    %493 = vmatprep.subr.mxu0 0.0
    %494 = vmatpush1.msra.mxu0 %v274
    %495 = vmatprep.subr.mxu0 0.0
    %496 = vmatpush1.msra.mxu0 %v279
    %497 = vmatprep.subr.mxu0 0.0
    %498 = vmatpush1.msra.mxu0 %v284
    %499 = vmatprep.subr.mxu0 0.0
    %500 = vmatpush1.msra.mxu0 %v289
    %501 = vmatprep.subr.mxu0 0.0
    %502 = vmatpush1.msra.mxu0 %v294
    %503 = vmatprep.subr.mxu0 0.0
    %504 = vmatpush1.msra.mxu0 %v299
    %505 = vmatprep.subr.mxu0 0.0
    %506 = vmatpush1.msra.mxu0 %v304
    %507 = vmatprep.subr.mxu0 0.0
    %508 = vmatpush1.msra.mxu0 %v309
    %509 = vmatprep.subr.mxu0 0.0
    %510 = vmatpush1.msra.mxu0 %v314
    %511 = vmatprep.subr.mxu0 0.0
    %512 = vmatpush1.msra.mxu0 %v319
    %513 = vmatprep.subr.mxu0 0.0
    %514 = vmatpush1.msra.mxu0 %v324
    %515 = vmatprep.subr.mxu0 0.0
    %516 = vmatpush1.msra.mxu0 %v329
    %517 = vmatprep.subr.mxu0 0.0
    %518 = vmatpush1.msra.mxu0 0.0
    %519 = vmatprep.subr.mxu0 0.0
    %520 = vmatpush1.msra.mxu0 0.0
    %521 = vmatprep.subr.mxu0 0.0
    %522 = vmatpush1.msra.mxu0 0.0
    %523 = vmatprep.subr.mxu0 0.0
    %524 = vmatpush1.msra.mxu0 0.0
    %525 = vmatprep.subr.mxu0 0.0
    %526 = vmatpush1.msra.mxu0 0.0
    %527 = vmatprep.subr.mxu0 0.0
    %528 = vmatpush1.msra.mxu0 0.0
    %529 = vmatprep.subr.mxu0 0.0
    %530 = vmatpush1.msra.mxu0 0.0
    %531 = vmatprep.subr.mxu0 0.0
    %532 = vmatpush1.msra.mxu0 0.0
    %533 = vmatprep.subr.mxu0 0.0
    %534 = vmatpush1.msra.mxu0 0.0
    %535 = vmatprep.subr.mxu0 0.0
    %536 = vmatpush1.msra.mxu0 0.0
    %537 = vmatprep.subr.mxu0 0.0
    %538 = vmatpush1.msra.mxu0 0.0
    %539 = vmatprep.subr.mxu0 0.0
    %540 = vmatpush1.msra.mxu0 0.0
    %541 = vmatprep.subr.mxu0 0.0
    %542 = vmatpush1.msra.mxu0 0.0
    %543 = vmatprep.subr.mxu0 0.0
    %544 = vmatpush1.msra.mxu0 0.0
    %545 = vmatprep.subr.mxu0 0.0
    %546 = vmatpush1.msra.mxu0 0.0
    %547 = vmatprep.subr.mxu0 0.0
    %548 = vmatpush1.msra.mxu0 0.0
    %549 = vmatprep.mubr.f32.mxu0 0.0
    %550 = vmatmul.mubr.f32.gmra.mrb[0].mxu0 %v484
    %v551 = vpop.f32.mrb[0].mxu0
    %v552 = vadd.f32 0.0, %v551
    %v553 = vpop.f32.mrb[0].mxu0
    %554 = vdwg.mxu0
    %555 = vst [vmem:[#allocation6] sm:$0x1] %v552
    // Predicated region
    $region22: #{tpu_custom_call.1} parent=1 // pred_check
      _
    $region23: #{tpu_custom_call.1} parent=1 // pred_check_branch
      %557 = sbr.rel (0) target = $region25
    $region24: #{tpu_custom_call.1} parent=1 // pred_region
      %s559 = ssub.s32 1024, 1024
      %560 = vsyncadd [#allocation3], %s559
      %s561 = sshll.u32 [#allocation2], 4
      %s562 = int_to_ptr.vmem [resolvable:$true] %s561
      %567 = dma.vmem_to_hbm [thread:$0]  %s562, 1024, %s5, [#allocation3], 64, 64, 4
    $region25: #{tpu_custom_call.1} parent=1 // pred_fallthru
      _
    // Predicated region
    $region26: #{tpu_custom_call.1} parent=1 // pred_check
      _
    $region27: #{tpu_custom_call.1} parent=1 // pred_check_branch
      %569 = sbr.rel (0) target = $region29
    $region28: #{tpu_custom_call.1} parent=1 // pred_region
      %s571 = ssub.s32 16, 16
      %572 = vsyncadd [#allocation5], %s571
      %s574 = sshll.u32 [#allocation4], 4
      %s575 = int_to_ptr.vmem [resolvable:$true] %s574
      %577 = dma.vmem_to_hbm [thread:$0]  %s575, 16, %s6, [#allocation5]
    $region29: #{tpu_custom_call.1} parent=1 // pred_fallthru
      _
    // Predicated region
    $region30: #{tpu_custom_call.1} parent=1 // pred_check
      _
    $region31: #{tpu_custom_call.1} parent=1 // pred_check_branch
      %579 = sbr.rel (0) target = $region33
    $region32: #{tpu_custom_call.1} parent=1 // pred_region
      %s581 = ssub.s32 16, 16
      %582 = vsyncadd [#allocation5], %s581
      %s584 = sshll.u32 [#allocation6], 4
      %s585 = int_to_ptr.vmem [resolvable:$true] %s584
      %587 = dma.vmem_to_hbm [thread:$0]  %s585, 16, %s7, [#allocation5]
    $region33: #{tpu_custom_call.1} parent=1 // pred_fallthru
      _
    // Predicated region
    $region34: #{tpu_custom_call.1} parent=1 // pred_check
      _
    $region35: #{tpu_custom_call.1} parent=1 // pred_check_branch
      %589 = sbr.rel (0) target = $region37
    $region36: #{tpu_custom_call.1} parent=1 // pred_region
      %590 = dma.done [#allocation3], 1024
    $region37: #{tpu_custom_call.1} parent=1 // pred_fallthru
      _
    // Predicated region
    $region38: #{tpu_custom_call.1} parent=1 // pred_check
      _
    $region39: #{tpu_custom_call.1} parent=1 // pred_check_branch
      %592 = sbr.rel (0) target = $region41
    $region40: #{tpu_custom_call.1} parent=1 // pred_region
      %593 = dma.done [#allocation5], 16
    $region41: #{tpu_custom_call.1} parent=1 // pred_fallthru
      _
    // Predicated region
    $region42: #{tpu_custom_call.1} parent=1 // pred_check
      _
    $region43: #{tpu_custom_call.1} parent=1 // pred_check_branch
      %595 = sbr.rel (0) target = $region45
    $region44: #{tpu_custom_call.1} parent=1 // pred_region
      %596 = dma.done [#allocation5], 16
    $region45: #{tpu_custom_call.1} parent=1 // pred_fallthru
      _
    %597 = vsyncpa [#allocation3], 1
    %598 = vsyncpa [#allocation5], 1

</llo_original>
